<compile_context>
chip_gen: v7x
topology: tpu7x:2x2x1
jax: 0.10.0
libtpu: 0.0.40
codegen_flags: <defaults>
</compile_context>

<pallas_src>
import functools

import jax
import jax.numpy as jnp
from jax.experimental import pallas as pl
from jax.experimental.pallas import tpu as pltpu

LANES = 128
SUBLANES = 8


def _bce_partial_kernel(pred_ref, gt_ref, out_ref, *, tile_rows, valid_rows):
    """One grid step: BCE-with-logits over a (tile_rows, 128) block, folded to an
    (8, 128) vreg of partial sums written to this step's own output block."""
    x = pred_ref[...].astype(jnp.float32)
    y = gt_ref[...].astype(jnp.float32)

    # numerically-stable BCE with logits (matches torch.nn.BCEWithLogitsLoss):
    #   loss = max(x, 0) - x*y + log(1 + exp(-|x|))
    # exp/log1p run on the EUP (its own VLIW slot) and hide under the HBM DMA.
    per_elem = jnp.maximum(x, 0.0) - x * y + jnp.log1p(jnp.exp(-jnp.abs(x)))

    if valid_rows is not None:
        # Ragged final block: rows >= valid_rows were never DMA'd (stale VMEM /
        # garbage). Mask AFTER computing per_elem — select discards NaN/Inf.
        row_ids = (pl.program_id(0) * tile_rows
                   + jax.lax.broadcasted_iota(jnp.int32, (tile_rows, LANES), 0))
        per_elem = jnp.where(row_ids < valid_rows, per_elem, 0.0)

    # Fold (tile_rows, 128) -> (8, 128): the sublane split matches the native
    # (8, 128) tiling, so this is a tree of whole-vreg VPU adds (no cross-lane
    # reduction, no serial accumulator chain).
    partial = per_elem.reshape(tile_rows // SUBLANES, SUBLANES, LANES).sum(axis=0)
    out_ref[...] = partial.reshape(1, SUBLANES, LANES)


def confidence_loss(prediction, gt_con, gt_weight=None, *, tile_rows=None):
    """Pallas equivalent of ConfidenceLoss.forward (gt_weight is unused, as in torch)."""
    del gt_weight  # present in the torch signature but unused by forward
    total_n = prediction.size
    elt_bytes = prediction.dtype.itemsize

    pred_flat = prediction.reshape(-1)
    gt_flat = gt_con.reshape(-1)

    # ---- layout: lane-dense (rows, 128) slab --------------------------------
    rows = pl.cdiv(total_n, LANES)
    pad = rows * LANES - total_n
    if pad:
        # Rare path (element count not a multiple of 128): pad only to the next
        # multiple of 128. Pad values (x=large, y=1) give exactly zero loss:
        # max(x,0) - x*y == 0 and exp(-x) underflows to 0.
        try:
            pad_val = min(1e4, float(jnp.finfo(pred_flat.dtype).max))
        except Exception:
            pad_val = 1e4
        pred_flat = jnp.concatenate(
            [pred_flat, jnp.full((pad,), pad_val, dtype=pred_flat.dtype)])
        gt_flat = jnp.concatenate(
            [gt_flat, jnp.ones((pad,), dtype=gt_flat.dtype)])

    pred2d = pred_flat.reshape(rows, LANES)
    gt2d = gt_flat.reshape(rows, LANES)

    # ---- tile sizing ---------------------------------------------------------
    # ~2 MiB per input block: 4096 rows (f32) / 8192 rows (bf16), capped at 8192.
    # 2 inputs x 3 buffers x 2 MiB + f32 temporaries stays well inside the
    # 48 MiB limit requested below (itself under v7x's 64 MiB physical per TC).
    if tile_rows is None:
        tile_rows = max(SUBLANES, (2 * 1024 * 1024) // (LANES * elt_bytes))
        tile_rows = min(tile_rows, 8192)
    rows8 = pl.cdiv(rows, SUBLANES) * SUBLANES
    tr = min(int(tile_rows), rows8)
    tr = pl.cdiv(tr, SUBLANES) * SUBLANES          # multiple of 8 -> (8,128)-legal block
    num_tiles = pl.cdiv(rows, tr)

    # Only the final block can be ragged; mask it in-kernel instead of padding
    # the whole array (the old concatenate path roughly tripled HBM traffic).
    valid_rows = rows if (num_tiles * tr != rows) else None

    kernel = functools.partial(_bce_partial_kernel, tile_rows=tr,
                               valid_rows=valid_rows)

    cost = pl.CostEstimate(
        flops=7 * total_n,
        transcendentals=2 * total_n,
        bytes_accessed=2 * elt_bytes * total_n + num_tiles * SUBLANES * LANES * 4,
    )

    def build(pipeline_mode):
        spec_kwargs = {} if pipeline_mode is None else {"pipeline_mode": pipeline_mode}
        return pl.pallas_call(
            kernel,
            out_shape=jax.ShapeDtypeStruct((num_tiles, SUBLANES, LANES), jnp.float32),
            grid_spec=pltpu.PrefetchScalarGridSpec(
                num_scalar_prefetch=0,
                grid=(num_tiles,),
                in_specs=[
                    pl.BlockSpec((tr, LANES), lambda i: (i, 0), **spec_kwargs),
                    pl.BlockSpec((tr, LANES), lambda i: (i, 0), **spec_kwargs),
                ],
                out_specs=pl.BlockSpec((1, SUBLANES, LANES), lambda i: (i, 0, 0)),
            ),
            compiler_params=pltpu.CompilerParams(
                dimension_semantics=("parallel",),
                vmem_limit_bytes=48 * 1024 * 1024,
            ),
            cost_estimate=cost,
        )

    try:
        # Nearly pure DMA workload: a third input buffer hides issue/turnaround
        # latency. Fall back to the default double buffer if unsupported.
        partials = build(pl.Buffered(3))(pred2d, gt2d)
    except Exception:
        partials = build(None)(pred2d, gt2d)

    # Tiny final reduction (num_tiles x 8 x 128 f32) done in plain JAX.
    return jnp.sum(partials) / jnp.float32(total_n)


def _reference_bce_with_logits(prediction, gt_con):
    x = prediction.astype(jnp.float32)
    y = gt_con.astype(jnp.float32)
    per_elem = jnp.maximum(x, 0.0) - x * y + jnp.log1p(jnp.exp(-jnp.abs(x)))
    return jnp.mean(per_elem)


if __name__ == "__main__":
    key = jax.random.PRNGKey(0)
    k1, k2, k3 = jax.random.split(key, 3)

    # prediction: logits, NCHW-shaped like the upstream conv head output
    prediction = jax.random.normal(k1, (2, 4, 16, 16), dtype=jnp.float32)
    # gt_con: confidence targets in [0, 1]
    gt_con = jax.random.uniform(k2, (2, 4, 16, 16), dtype=jnp.float32)
    # gt_weight: present in the torch signature but unused by forward
    gt_weight = jax.random.uniform(k3, (2, 4, 16, 16), dtype=jnp.float32)

    loss = confidence_loss(prediction, gt_con, gt_weight)
    loss = jax.block_until_ready(loss)

    ref = _reference_bce_with_logits(prediction, gt_con)
    assert jnp.allclose(loss, ref, rtol=1e-5, atol=1e-6), (loss, ref)

    # non-(128)-divisible size: exercises the tiny 128-alignment pad + the
    # ragged-final-block row mask
    n_odd = 3 * 5 * 17 * 19  # = 4845 elements
    podd = jax.random.normal(k1, (n_odd,), dtype=jnp.float32)
    godd = jax.random.uniform(k2, (n_odd,), dtype=jnp.float32)
    loss_odd = jax.block_until_ready(confidence_loss(podd, godd))
    ref_odd = _reference_bce_with_logits(podd, godd)
    assert jnp.allclose(loss_odd, ref_odd, rtol=1e-5, atol=1e-6), (loss_odd, ref_odd)

    # same input with a tiny forced tile: multiple grid steps + ragged last
    # block, exercising the program_id-based row mask across tiles
    loss_multi = jax.block_until_ready(confidence_loss(podd, godd, tile_rows=16))
    assert jnp.allclose(loss_multi, ref_odd, rtol=1e-5, atol=1e-6), (loss_multi, ref_odd)

    print("KERNEL_OK")
</pallas_src>

<mosaic_0001>
module attributes {stable_mosaic.version = 11 : i64} {
  func.func @_bce_partial_kernel(%arg0: i32, %arg1: memref<16x128xf32, #tpu.memory_space<vmem>>, %arg2: memref<16x128xf32, #tpu.memory_space<vmem>>, %arg3: memref<1x8x128xf32, #tpu.memory_space<vmem>>) attributes {dimension_semantics = [#tpu.dimension_semantics<parallel>], iteration_bounds = array<i64: 1>, scalar_prefetch = 0 : i64, scratch_operands = 0 : i64, tpu.core_type = #tpu.core_type<tc>, window_params = [{transform_indices = @transform_0, window_bounds = array<i64: 16, 128>}, {transform_indices = @transform_1, window_bounds = array<i64: 16, 128>}, {transform_indices = @transform_2, window_bounds = array<i64: 1, 8, 128>}]} {
    %c0 = arith.constant 0 : index
    %c0_0 = arith.constant 0 : index
    %0 = vector.load %arg1[%c0, %c0_0] : memref<16x128xf32, #tpu.memory_space<vmem>>, vector<16x128xf32>
    %c0_1 = arith.constant 0 : index
    %c0_2 = arith.constant 0 : index
    %1 = vector.load %arg2[%c0_1, %c0_2] : memref<16x128xf32, #tpu.memory_space<vmem>>, vector<16x128xf32>
    %cst = arith.constant 0.000000e+00 : f32
    %2 = vector.broadcast %cst : f32 to vector<16x128xf32>
    %3 = arith.maximumf %0, %2 : vector<16x128xf32>
    %4 = arith.mulf %0, %1 : vector<16x128xf32>
    %5 = arith.subf %3, %4 : vector<16x128xf32>
    %6 = math.absf %0 : vector<16x128xf32>
    %cst_3 = arith.constant 0.000000e+00 : f32
    %7 = vector.broadcast %cst_3 : f32 to vector<16x128xf32>
    %8 = arith.subf %7, %6 : vector<16x128xf32>
    %9 = math.exp %8 : vector<16x128xf32>
    %10 = math.log1p %9 : vector<16x128xf32>
    %11 = arith.addf %5, %10 : vector<16x128xf32>
    %12 = vector.shape_cast %11 : vector<16x128xf32> to vector<2x8x128xf32>
    %cst_4 = arith.constant dense<0.000000e+00> : vector<8x128xf32>
    %13 = vector.multi_reduction <add>, %12, %cst_4 [0] : vector<2x8x128xf32> to vector<8x128xf32>
    %14 = vector.shape_cast %13 : vector<8x128xf32> to vector<1x8x128xf32>
    %c0_5 = arith.constant 0 : index
    %c0_6 = arith.constant 0 : index
    %c0_7 = arith.constant 0 : index
    %15 = vector.load %arg3[%c0_5, %c0_6, %c0_7] : memref<1x8x128xf32, #tpu.memory_space<vmem>>, vector<1x8x128xf32>
    tpu.vector_store %arg3[%c0_5, %c0_6, %c0_7], %14 {strides = array<i32>} : memref<1x8x128xf32, #tpu.memory_space<vmem>>, vector<1x8x128xf32>,
    return
  }
  func.func @transform_0(%arg0: i32) -> (i32, i32) {
    %c0_i32 = arith.constant 0 : i32
    %c0_i32_0 = arith.constant 0 : i32
    return %arg0, %c0_i32 : i32, i32
  }
  func.func @transform_1(%arg0: i32) -> (i32, i32) {
    %c0_i32 = arith.constant 0 : i32
    %c0_i32_0 = arith.constant 0 : i32
    return %arg0, %c0_i32 : i32, i32
  }
  func.func @transform_2(%arg0: i32) -> (i32, i32, i32) {
    %c0_i32 = arith.constant 0 : i32
    %c0_i32_0 = arith.constant 0 : i32
    %c0_i32_1 = arith.constant 0 : i32
    return %arg0, %c0_i32, %c0_i32_0 : i32, i32, i32
  }
}

</mosaic_0001>

<llo_original>
// kernel: tpu_custom_call.1
$region0: #{tpu_custom_call.1}
  #allocation0 [shape = 'u32[]', space=smem, size = 0x4, offset = 0x4, fixed_abs, tag = 'smem constant byte address 0x4 - core index']
  #allocation1 [shape = 'u32[144,128]{1,0:T(1,128)}', space=vmem, size = 0x12000, scoped, tag = 'internal scratch']
  %s0 = inlined_call_operand.hbm [shape: f32[16,128], index: 0, kind: input, shape index: {}]
  %s1 = inlined_call_operand.hbm [shape: f32[16,128], index: 1, kind: input, shape index: {}]
  %s2 = inlined_call_operand.hbm [shape: f32[1,8,128], index: 2, kind: output, shape index: {}]
  %s3 = sld [smem:[#allocation0]]
  $region26: #{tpu_custom_call.1} parent=0
    _
  %s5 = ssub.s32 1, %s3
  %s6 = scalar_select 0, %s5, %s3
  $region1: #{tpu_custom_call.1} parent=0
    #allocation2 [shape = 'u8[8192]{0}', space=vmem, size = 0x2000, scoped, tag = 'input window, operand 0, single buffered']
    #allocation3 [shape = 's32[1]{0}', space=sflag, size = 0x4, scoped, tag = 'scoped memory for tpu_custom_call.1']
    #allocation4 [shape = 's32[1]{0}', space=sflag, size = 0x4, scoped, tag = 'scoped memory for tpu_custom_call.1']
    #allocation5 [shape = 'u8[8192]{0}', space=vmem, size = 0x2000, scoped, tag = 'input window, operand 1, single buffered']
    #allocation6 [shape = 's32[1]{0}', space=sflag, size = 0x4, scoped, tag = 'scoped memory for tpu_custom_call.1']
    #allocation7 [shape = 'u8[4096]{0}', space=vmem, size = 0x1000, scoped, tag = 'output window, operand 0, single buffered']
    %7 = vsyncpa [#allocation3], 0
    %8 = vsyncpa [#allocation6], 0
    %9 = vsyncpa [#allocation4], 0
    // Predicated region
    $region2: #{tpu_custom_call.1} parent=1 // pred_check
      _
    $region3: #{tpu_custom_call.1} parent=1 // pred_check_branch
      %11 = sbr.rel (0) target = $region5
    $region4: #{tpu_custom_call.1} parent=1 // pred_region
      %s13 = ssub.s32 256, 256
      %14 = vsyncadd [#allocation3], %s13
      %s15 = sshll.u32 [#allocation2], 4
      %s16 = int_to_ptr.vmem [resolvable:$true] %s15
      %21 = dma.hbm_to_vmem [thread:$0]  %s0, 256, %s16, [#allocation3], 128, 128, 8
    $region5: #{tpu_custom_call.1} parent=1 // pred_fallthru
      _
    // Predicated region
    $region6: #{tpu_custom_call.1} parent=1 // pred_check
      _
    $region7: #{tpu_custom_call.1} parent=1 // pred_check_branch
      %23 = sbr.rel (0) target = $region9
    $region8: #{tpu_custom_call.1} parent=1 // pred_region
      %s25 = ssub.s32 256, 256
      %26 = vsyncadd [#allocation6], %s25
      %s27 = sshll.u32 [#allocation5], 4
      %s28 = int_to_ptr.vmem [resolvable:$true] %s27
      %33 = dma.hbm_to_vmem [thread:$0]  %s1, 256, %s28, [#allocation6], 128, 128, 8
    $region9: #{tpu_custom_call.1} parent=1 // pred_fallthru
      _
    // Predicated region
    $region10: #{tpu_custom_call.1} parent=1 // pred_check
      _
    $region11: #{tpu_custom_call.1} parent=1 // pred_check_branch
      %35 = sbr.rel (0) target = $region13
    $region12: #{tpu_custom_call.1} parent=1 // pred_region
      %36 = dma.done [#allocation3], 256
    $region13: #{tpu_custom_call.1} parent=1 // pred_fallthru
      _
    // Predicated region
    $region14: #{tpu_custom_call.1} parent=1 // pred_check
      _
    $region15: #{tpu_custom_call.1} parent=1 // pred_check_branch
      %38 = sbr.rel (0) target = $region17
    $region16: #{tpu_custom_call.1} parent=1 // pred_region
      %39 = dma.done [#allocation6], 256
    $region17: #{tpu_custom_call.1} parent=1 // pred_fallthru
      _
    %v40 = vld [vmem:[#allocation2] sm:$0xff]
    %v41 = vld [vmem:[#allocation2 + $0x8] sm:$0xff]
    %v42 = vld [vmem:[#allocation5] sm:$0xff]
    %v43 = vld [vmem:[#allocation5 + $0x8] sm:$0xff]
    %v44 = vmax.f32 %v40, 0.0
    %v45 = vmax.f32 %v41, 0.0
    %v46 = vmul.f32 %v40, %v42
    %v47 = vmul.f32 %v41, %v43
    %v48 = vsub.f32 %v44, %v46
    %v49 = vsub.f32 %v45, %v47
    %v50 = vand.u32 2147483647, %v40
    %v51 = vand.u32 2147483647, %v41
    %v52 = vsub.f32 0.0, %v50
    %v53 = vsub.f32 0.0, %v51
    %v54 = vmul.f32 %v52, 1.442695
    %v55 = vpow.pop %v54
    %v56 = vmul.f32 %v53, 1.442695
    %v57 = vpow.pop %v56
    %v58 = vadd.f32 %v55, 1.0
    %v59 = vlog2.pop %v58
    %v60 = vmul.f32 %v59, 0.6931472
    %v61 = vmul.f32 -0.5, %v55
    %v62 = vadd.f32 %v61, 1.0
    %v63 = vmul.f32 %v62, %v55
    %v64 = vand.u32 2147483647, %v55
    %vm65 = vcmp.lt.f32.partialorder %v64, 0.0004427343
    %v66 = vsel %vm65, %v63, %v60
    %v67 = vadd.f32 %v57, 1.0
    %v68 = vlog2.pop %v67
    %v69 = vmul.f32 %v68, 0.6931472
    %v70 = vmul.f32 -0.5, %v57
    %v71 = vadd.f32 %v70, 1.0
    %v72 = vmul.f32 %v71, %v57
    %v73 = vand.u32 2147483647, %v57
    %vm74 = vcmp.lt.f32.partialorder %v73, 0.0004427343
    %v75 = vsel %vm74, %v72, %v69
    %v76 = vadd.f32 %v48, %v66
    %v77 = vadd.f32 %v49, %v75
    %v78 = vadd.f32 %v76, %v77
    %79 = vst [vmem:[#allocation7] sm:$0xff] %v78
    // Predicated region
    $region18: #{tpu_custom_call.1} parent=1 // pred_check
      _
    $region19: #{tpu_custom_call.1} parent=1 // pred_check_branch
      %81 = sbr.rel (0) target = $region21
    $region20: #{tpu_custom_call.1} parent=1 // pred_region
      %s83 = ssub.s32 128, 128
      %84 = vsyncadd [#allocation4], %s83
      %s86 = sshll.u32 [#allocation7], 4
      %s87 = int_to_ptr.vmem [resolvable:$true] %s86
      %89 = dma.vmem_to_hbm [thread:$0]  %s87, 128, %s2, [#allocation4]
    $region21: #{tpu_custom_call.1} parent=1 // pred_fallthru
      _
    // Predicated region
    $region22: #{tpu_custom_call.1} parent=1 // pred_check
      _
    $region23: #{tpu_custom_call.1} parent=1 // pred_check_branch
      %91 = sbr.rel (0) target = $region25
    $region24: #{tpu_custom_call.1} parent=1 // pred_region
      %92 = dma.done [#allocation4], 128
    $region25: #{tpu_custom_call.1} parent=1 // pred_fallthru
      _
    %93 = vsyncpa [#allocation3], 1
    %94 = vsyncpa [#allocation6], 1
    %95 = vsyncpa [#allocation4], 1

</llo_original>
